<compile_context>
chip_gen: v6e
topology: v6e:2x2x1
jax: 0.10.0
libtpu: 0.0.40
codegen_flags: <defaults>
</compile_context>

<pallas_src>
import functools

import jax
import jax.numpy as jnp
from jax.experimental import pallas as pl
from jax.experimental.pallas import tpu as pltpu


# ---------------------------------------------------------------------------
# Kernels
# ---------------------------------------------------------------------------
def _expand_block_kernel(x_ref, o_ref):
    # x_ref block: (nb, 1, hw_tile); o_ref block: (nb, c_tile, hw_tile).
    # Pure sublane broadcast over the channel axis — VPU/XLU only, no MXU.
    o_ref[...] = jnp.broadcast_to(x_ref[...], o_ref.shape)


def _expand_flat_kernel(x_ref, o_ref, *, out_ch):
    # x_ref block: (nb, HW); o_ref block: (nb, out_ch*HW) — the output's
    # NCHW-contiguous per-batch row.  Replicate the HW row out_ch times along
    # the lane axis; the lane shifts behind the concat are free filler for a
    # purely HBM-bound kernel and the store stays lane-dense per row.
    row = x_ref[...]
    o_ref[...] = jnp.concatenate([row] * out_ch, axis=-1)


# ---------------------------------------------------------------------------
# Tile choosers (VMEM-budget aware, sublane/lane-padding aware)
# ---------------------------------------------------------------------------
def _pad_up(x, m):
    return -(-x // m) * m


def _divisors_desc(n):
    return [d for d in range(n, 0, -1) if n % d == 0]


def _sublane_pack(itemsize):
    # f32 -> 8, bf16/f16 -> 16, int8/fp8 -> 32 sublanes per native tile.
    return max(8, 32 // itemsize)


def _choose_tiles_nchw(n, out_ch, hw, itemsize, budget):
    """Pick (nb, c_tile, hw_tile) for the (N, out_ch, HW) output layout."""
    pack = _sublane_pack(itemsize)
    # Lane tiles: full HW (always layout-legal) or 128-multiple divisors.
    hw_cands = [hw] + [d for d in _divisors_desc(hw) if d % 128 == 0 and d != hw]
    # Channel tiles: full out_ch (always legal) or pack-multiple divisors.
    c_cands = [out_ch] + [d for d in _divisors_desc(out_ch)
                          if d % pack == 0 and d != out_ch]

    def step_bytes(nb, c_t, hw_t):
        # Double-buffered input + output blocks, with padding:
        #  * the size-1 input channel dim pads to `pack` sublanes,
        #  * c_tile pads to `pack`, hw_tile pads to 128 lanes.
        in_blk = nb * pack * _pad_up(hw_t, 128)
        out_blk = nb * _pad_up(c_t, pack) * _pad_up(hw_t, 128)
        return 2 * (in_blk + out_blk) * itemsize

    choice = None
    for hw_t in hw_cands:            # prefer lane-large tiles ...
        for c_t in c_cands:          # ... shrinking channels before lanes
            if step_bytes(1, c_t, hw_t) <= budget:
                nb = 1
                for d in _divisors_desc(n):   # amortize per-step overhead
                    if step_bytes(d, c_t, hw_t) <= budget:
                        nb = d
                        break
                choice = [nb, c_t, hw_t]
                break
        if choice is not None:
            break
    if choice is None:
        # Even the smallest legal tile exceeds the budget; take it anyway
        # (caller may raise vmem_budget_bytes / vmem_limit_bytes).
        choice = [1, c_cands[-1], hw_cands[-1]]

    nb, c_t, hw_t = choice
    # Megacore: never leave a single-block grid when the work is splittable,
    # so both TensorCores (v7x) get blocks.  Split batch, then HW, then C.
    if (n // nb) * (out_ch // c_t) * (hw // hw_t) < 2:
        split_nb = next((d for d in _divisors_desc(n) if d <= n // 2), None)
        if split_nb is not None:
            nb = split_nb
        elif hw_t % 256 == 0:
            hw_t //= 2
        elif len(c_cands) > 1:
            c_t = c_cands[1]
    return nb, c_t, hw_t


def _choose_batch_flat(n, out_ch, hw, itemsize, budget):
    """Pick nb for the flattened (N, out_ch*HW) output layout, or None."""
    pack = _sublane_pack(itemsize)
    # Second-minor block dim must be a multiple of the pack or the full N.
    legal_nbs = [d for d in _divisors_desc(n) if d == n or d % pack == 0]

    def step_bytes(nb):
        nb_p = _pad_up(nb, pack)
        return 2 * nb_p * (_pad_up(hw, 128) + _pad_up(out_ch * hw, 128)) * itemsize

    nb = next((d for d in legal_nbs if step_bytes(d) <= budget), None)
    if nb is None:
        return None                      # caller falls back to the tiled path
    # Megacore: prefer >= 2 batch blocks when a smaller legal nb exists.
    if n // nb < 2:
        smaller = next((d for d in legal_nbs if d <= n // 2), None)
        if smaller is not None:
            nb = smaller
    return nb


# ---------------------------------------------------------------------------
# Wrapper
# ---------------------------------------------------------------------------
def expand_channels(x, out_ch, *, vmem_budget_bytes=12 * 1024 * 1024):
    """x: (N, 1, H, W) NCHW. Returns (N, out_ch, H, W), channels broadcast.

    vmem_budget_bytes: double-buffered in+out working-set budget.  12 MiB is
    safe under every generation's scoped-VMEM default (v5e 16 / v6e 32 /
    v7x 32 MiB); pass ~24 MiB on v6e or ~40 MiB on v7x for larger tiles.
    """
    N, C_in, H, W = x.shape
    if C_in == out_ch:
        # torch .expand(-1, out_ch, -1, -1) is a no-op view in this case.
        return x
    assert C_in == 1, (
        "ExpandChannels requires the channel dim to be 1 (or already out_ch); "
        f"got C_in={C_in}, out_ch={out_ch}")

    HW = H * W
    itemsize = jnp.dtype(x.dtype).itemsize
    bytes_accessed = (N * HW + N * out_ch * HW) * itemsize
    cost = pl.CostEstimate(flops=0, transcendentals=0,
                           bytes_accessed=bytes_accessed)

    # ---- Path B: HW not lane-aligned -> write the NCHW-contiguous
    #      (N, out_ch*HW) view so stores are lane-dense per batch row. -------
    if HW % 128 != 0:
        nb = _choose_batch_flat(N, out_ch, HW, itemsize, vmem_budget_bytes)
        if nb is not None:
            x_flat = x.reshape(N, HW)
            out = pl.pallas_call(
                functools.partial(_expand_flat_kernel, out_ch=out_ch),
                out_shape=jax.ShapeDtypeStruct((N, out_ch * HW), x.dtype),
                grid=(N // nb,),
                in_specs=[pl.BlockSpec((nb, HW), lambda n: (n, 0))],
                out_specs=pl.BlockSpec((nb, out_ch * HW), lambda n: (n, 0)),
                compiler_params=pltpu.CompilerParams(
                    dimension_semantics=("parallel",)),
                cost_estimate=cost,
            )(x_flat)
            return out.reshape(N, out_ch, H, W)
        # else: a single batch row's working set exceeds the budget — fall
        # through to the tiled path (correct, but with masked lane tails).

    # ---- Path A: lane-aligned (or fallback) tiled broadcast. ---------------
    nb, c_tile, hw_tile = _choose_tiles_nchw(N, out_ch, HW, itemsize,
                                             vmem_budget_bytes)
    x3 = x.reshape(N, 1, HW)
    grid = (N // nb, HW // hw_tile, out_ch // c_tile)

    out = pl.pallas_call(
        _expand_block_kernel,
        out_shape=jax.ShapeDtypeStruct((N, out_ch, HW), x.dtype),
        grid=grid,
        in_specs=[
            # (1, hw_tile) last-two dims: 1 == full channel dim, hw_tile is a
            # 128-multiple or the full HW -> layout-legal for any nb, dtype.
            # The channel grid index is ignored -> the input block stays
            # resident across the (innermost) channel axis, no re-DMA.
            pl.BlockSpec((nb, 1, hw_tile), lambda n, s, c: (n, 0, s)),
        ],
        # (c_tile, hw_tile) last-two dims: c_tile is the full out_ch or a
        # sublane-pack multiple; hw_tile lane-dense -> unmasked vector stores.
        out_specs=pl.BlockSpec((nb, c_tile, hw_tile), lambda n, s, c: (n, c, s)),
        compiler_params=pltpu.CompilerParams(
            dimension_semantics=("parallel", "parallel", "parallel")),
        cost_estimate=cost,
    )(x3)
    return out.reshape(N, out_ch, H, W)


def _ref_forward(x, out_ch):
    """Pure-JAX reference mirroring torch's x.expand(-1, out_ch, -1, -1)."""
    N, C_in, H, W = x.shape
    if C_in == out_ch:
        return x
    return jnp.broadcast_to(x, (N, out_ch, H, W))


if __name__ == "__main__":
    key = jax.random.PRNGKey(0)
    k1, k2, k3 = jax.random.split(key, 3)

    # 1) Lane-aligned HW (16x16), small out_ch -> tiled broadcast path.
    x = jax.random.normal(k1, (2, 1, 16, 16), jnp.float32)
    out = jax.block_until_ready(expand_channels(x, 4))
    ref = _ref_forward(x, 4)
    assert out.shape == (2, 4, 16, 16)
    assert jnp.array_equal(out, ref)

    # 2) Non-128-multiple HW (7x7) -> lane-dense flattened-row path.
    x2 = jax.random.normal(k2, (2, 1, 7, 7), jnp.float32)
    out2 = jax.block_until_ready(expand_channels(x2, 3))
    ref2 = _ref_forward(x2, 3)
    assert out2.shape == (2, 3, 7, 7)
    assert jnp.array_equal(out2, ref2)

    # 3) Larger out_ch with a tiny budget -> exercises channel tiling with a
    #    resident input block.
    x3 = jax.random.normal(k3, (2, 1, 16, 16), jnp.float32)
    out3 = jax.block_until_ready(
        expand_channels(x3, 16, vmem_budget_bytes=40 * 1024))
    ref3 = _ref_forward(x3, 16)
    assert out3.shape == (2, 16, 16, 16)
    assert jnp.array_equal(out3, ref3)

    print("KERNEL_OK")
</pallas_src>

<mosaic_0001>
module attributes {stable_mosaic.version = 11 : i64} {
  func.func @_expand_block_kernel(%arg0: i32, %arg1: i32, %arg2: i32, %arg3: memref<1x1x256xf32, #tpu.memory_space<vmem>>, %arg4: memref<1x4x256xf32, #tpu.memory_space<vmem>>) attributes {dimension_semantics = [#tpu.dimension_semantics<parallel>, #tpu.dimension_semantics<parallel>, #tpu.dimension_semantics<parallel>], iteration_bounds = array<i64: 2, 1, 1>, scalar_prefetch = 0 : i64, scratch_operands = 0 : i64, tpu.core_type = #tpu.core_type<tc>, window_params = [{transform_indices = @transform_0, window_bounds = array<i64: 1, 1, 256>}, {transform_indices = @transform_1, window_bounds = array<i64: 1, 4, 256>}]} {
    %c0 = arith.constant 0 : index
    %c0_0 = arith.constant 0 : index
    %c0_1 = arith.constant 0 : index
    %0 = vector.load %arg3[%c0, %c0_0, %c0_1] : memref<1x1x256xf32, #tpu.memory_space<vmem>>, vector<1x1x256xf32>
    %1 = vector.shape_cast %0 : vector<1x1x256xf32> to vector<1x1x256xf32>
    %2 = vector.broadcast %1 : vector<1x1x256xf32> to vector<1x4x256xf32>
    %c0_2 = arith.constant 0 : index
    %c0_3 = arith.constant 0 : index
    %c0_4 = arith.constant 0 : index
    %3 = vector.load %arg4[%c0_2, %c0_3, %c0_4] : memref<1x4x256xf32, #tpu.memory_space<vmem>>, vector<1x4x256xf32>
    tpu.vector_store %arg4[%c0_2, %c0_3, %c0_4], %2 {strides = array<i32>} : memref<1x4x256xf32, #tpu.memory_space<vmem>>, vector<1x4x256xf32>,
    return
  }
  func.func @transform_0(%arg0: i32, %arg1: i32, %arg2: i32) -> (i32, i32, i32) {
    %c0_i32 = arith.constant 0 : i32
    %c0_i32_0 = arith.constant 0 : i32
    return %arg0, %c0_i32, %arg1 : i32, i32, i32
  }
  func.func @transform_1(%arg0: i32, %arg1: i32, %arg2: i32) -> (i32, i32, i32) {
    %c0_i32 = arith.constant 0 : i32
    return %arg0, %arg2, %arg1 : i32, i32, i32
  }
}

</mosaic_0001>

<llo_original>
// kernel: tpu_custom_call.1
$region0: #{tpu_custom_call.1}
  #allocation0 [shape = 'u32[]', space=smem, size = 0x4, offset = 0x4, fixed_abs, tag = 'smem constant byte address 0x4 - core index']
  #allocation1 [shape = 'u32[144,128]{1,0:T(1,128)}', space=vmem, size = 0x12000, scoped, tag = 'internal scratch']
  %s0 = inlined_call_operand.hbm [shape: f32[2,1,256], index: 0, kind: input, shape index: {}]
  %s1 = inlined_call_operand.hbm [shape: f32[2,4,256], index: 1, kind: output, shape index: {}]
  %s2 = sld [smem:[#allocation0]]
  $region41: #{tpu_custom_call.1} parent=0
    _
  %s4 = ssub.s32 1, %s2
  %s5 = scalar_select 0, %s4, %s2
  $region1: #{tpu_custom_call.1} parent=0
    #allocation2 [shape = 'u8[2048]{0}', space=vmem, size = 0x800, scoped, tag = 'input window, operand 0']
    #allocation3 [shape = 's32[2]{0}', space=sflag, size = 0x8, scoped, tag = 'scoped memory for tpu_custom_call.1']
    #allocation4 [shape = 's32[2]{0}', space=sflag, size = 0x8, scoped, tag = 'scoped memory for tpu_custom_call.1']
    #allocation5 [shape = 'u8[8192]{0}', space=vmem, size = 0x2000, scoped, tag = 'output window, operand 0']
    %6 = vsyncpa [#allocation3], 0
    %s7 = scalar_lea.sflag [#allocation3], 1
    %8 = vsyncpa %s7, 0
    %9 = vsyncpa [#allocation4], 0
    %s10 = scalar_lea.sflag [#allocation4], 1
    %11 = vsyncpa %s10, 0
    loop: start=0, step=1, limit=4
    $region2: #{tpu_custom_call.1} parent=1 // loop_pre_header
      _
    $region3: #{tpu_custom_call.1} parent=1 // loop_header
      %s13 = sphi 0, %s17
      %p14 = scmp.ge.s32.totalorder %s13, 4
      %s20 = sphi 0, %s39
      %s21 = sphi 0, %s35
      %s22 = sphi 0, %s31
      %s23 = sphi 0, %s20
      %s24 = sphi 0, %s21
      %s25 = sphi 0, %s22
      %s26 = sphi 0, %s23
      %s27 = sphi 0, %s24
      %s28 = sphi 0, %s25
      %s44 = sphi 0, %s46
      %s47 = sphi 0, %s44
      %s48 = sphi 0, %s47
      %s64 = sphi 0, %s48
      %s74 = sphi 0, %s76
      %s77 = sphi 0, %s74
      %s78 = sphi 0, %s77
      %s94 = sphi 0, %s78
    $region4: #{tpu_custom_call.1} parent=1 // loop_header_branch
      %16 = sbr.rel (%p14) target = $region8
    $region5: #{tpu_custom_call.1} parent=1 // loop_body
      %s18 = ssub.s32 %s13, 1
      %s19 = ssub.s32 %s13, 2
      %s29 = sadd.s32 1, %s22
      %p30 = scmp.ge.s32.totalorder %s29, 1
      %s31 = scalar_select %p30, 0, %s29
      %s32 = sadd.s32 1, %s21
      %s33 = scalar_select %p30, %s32, %s21
      %p34 = scmp.ge.s32.totalorder %s33, 1
      %s35 = scalar_select %p34, 0, %s33
      %s36 = sadd.s32 1, %s20
      %s37 = scalar_select %p34, %s36, %s20
      %p38 = scmp.ge.s32.totalorder %s37, 2
      %s39 = scalar_select %p38, 0, %s37
      %s40 = ssub.s32 %s20, %s39
      %s41 = ssub.s32 %s21, %s35
      %s42 = sor.u32 %s40, %s41
      %p43 = scmp.eq.s32.totalorder %s42, 0
      %s45 = sadd.s32 %s44, 1
      %s46 = scalar_select %p43, %s44, %s45
      %p49 = pneg %p43
      %p50 = scmp.eq.s32.totalorder %s13, 1
      %p51 = por %p49, %p50
      %p52 = scmp.ne.s32.totalorder %s44, %s47
      %p53 = scmp.eq.s32.totalorder %s13, 0
      %p54 = por %p52, %p53
      %p55 = scmp.ne.s32.totalorder %s44, %s47
      %p56 = scmp.eq.s32.totalorder %s18, 1
      %p57 = por %p55, %p56
      %p58 = scmp.ne.s32.totalorder %s47, %s48
      %p59 = scmp.eq.s32.totalorder %s18, 0
      %p60 = por %p58, %p59
      %p61 = scmp.ne.s32.totalorder %s47, %s48
      %p62 = scmp.eq.s32.totalorder %s19, 1
      %p63 = por %p61, %p62
      %p65 = scmp.ne.s32.totalorder %s48, %s64
      %p66 = scmp.eq.s32.totalorder %s19, 0
      %p67 = por %p65, %p66
      %s68 = ssub.s32 %s20, %s39
      %s69 = ssub.s32 %s22, %s31
      %s70 = sor.u32 %s68, %s69
      %s71 = ssub.s32 %s21, %s35
      %s72 = sor.u32 %s70, %s71
      %p73 = scmp.eq.s32.totalorder %s72, 0
      %s75 = sadd.s32 %s74, 1
      %s76 = scalar_select %p73, %s74, %s75
      %p79 = pneg %p73
      %p80 = scmp.eq.s32.totalorder %s13, 1
      %p81 = por %p79, %p80
      %p82 = scmp.ne.s32.totalorder %s74, %s77
      %p83 = scmp.eq.s32.totalorder %s13, 0
      %p84 = por %p82, %p83
      %p85 = scmp.ne.s32.totalorder %s74, %s77
      %p86 = scmp.eq.s32.totalorder %s18, 1
      %p87 = por %p85, %p86
      %p88 = scmp.ne.s32.totalorder %s77, %s78
      %p89 = scmp.eq.s32.totalorder %s18, 0
      %p90 = por %p88, %p89
      %p91 = scmp.ne.s32.totalorder %s77, %s78
      %p92 = scmp.eq.s32.totalorder %s19, 1
      %p93 = por %p91, %p92
      %p95 = scmp.ne.s32.totalorder %s78, %s94
      %p96 = scmp.eq.s32.totalorder %s19, 0
      %p97 = por %p95, %p96
      %p98 = scmp.le.s32.totalorder 1, %s13
      %p99 = scmp.lt.s32.totalorder %s13, 3
      %p100 = pnand %p98, %p99
      %p101 = pneg %p100
      // Predicated region
      $region9: #{tpu_custom_call.1} parent=5 // pred_check
        _
      $region10: #{tpu_custom_call.1} parent=5 // pred_check_branch
        %103 = sbr.rel (%p100) target = $region12
      $region11: #{tpu_custom_call.1} parent=5 // pred_region
        %s104 = ssub.s32 %s13, 1
      $region12: #{tpu_custom_call.1} parent=5 // pred_fallthru
        _
      %p105 = scmp.lt.s32.totalorder %s13, 2
      // Predicated region
      $region13: #{tpu_custom_call.1} parent=5 // pred_check
        %p106 = pneg %p105
      $region14: #{tpu_custom_call.1} parent=5 // pred_check_branch
        %108 = sbr.rel (%p106) target = $region16
      $region15: #{tpu_custom_call.1} parent=5 // pred_region
        // Predicated region
        $region17: #{tpu_custom_call.1} parent=15 // pred_check
          %p109 = pneg %p54
        $region18: #{tpu_custom_call.1} parent=15 // pred_check_branch
          %111 = sbr.rel (%p109) target = $region20
        $region19: #{tpu_custom_call.1} parent=15 // pred_region
          %s112 = sand.u32 %s44, 1
          %s113 = scalar_lea.sflag [#allocation3], %s112
          %s114 = sand.u32 %s44, 1
          %s115 = smul.addr %s114, 2
          %s116 = scalar_lea.vmem [#allocation2], %s115
          %s117 = smul.u32 2, %s21
          %s119 = ssub.s32 32, 32
          %120 = vsyncadd %s113, %s119
          %s121 = smul.addr %s20, 2
          %s122 = sadd.s32 %s117, %s121
          %s123 = smul.addr %s122, 16
          %s124 = scalar_lea.hbm %s0, %s123
          %s126 = sshll.u32 %s116, 4
          %s127 = int_to_ptr.vmem [resolvable:$true] %s126
          %129 = dma.hbm_to_vmem [thread:$0]  %s124, 32, %s127, %s113
        $region20: #{tpu_custom_call.1} parent=15 // pred_fallthru
          _
      $region16: #{tpu_custom_call.1} parent=5 // pred_fallthru
        _
      %p130 = scmp.le.s32.totalorder 1, %s13
      %p131 = scmp.lt.s32.totalorder %s13, 3
      %p132 = pnand %p130, %p131
      %p133 = pneg %p132
      // Predicated region
      $region21: #{tpu_custom_call.1} parent=5 // pred_check
        _
      $region22: #{tpu_custom_call.1} parent=5 // pred_check_branch
        %135 = sbr.rel (%p132) target = $region24
      $region23: #{tpu_custom_call.1} parent=5 // pred_region
        %s136 = ssub.s32 %s13, 1
        %s137 = sand.u32 %s47, 1
        %s138 = scalar_lea.sflag [#allocation3], %s137
        %s139 = sand.u32 %s47, 1
        %s140 = smul.addr %s139, 2
        %s141 = scalar_lea.vmem [#allocation2], %s140
        // Predicated region
        $region25: #{tpu_custom_call.1} parent=23 // pred_check
          %p142 = pneg %p60
        $region26: #{tpu_custom_call.1} parent=23 // pred_check_branch
          %144 = sbr.rel (%p142) target = $region28
        $region27: #{tpu_custom_call.1} parent=23 // pred_region
          %145 = dma.done %s138, 32
        $region28: #{tpu_custom_call.1} parent=23 // pred_fallthru
          _
        %s146 = sand.u32 %s47, 1
        %s147 = scalar_lea.sflag [#allocation3], %s146
        %s148 = sand.u32 %s47, 1
        %s149 = smul.addr %s148, 2
        %s150 = scalar_lea.vmem [#allocation2], %s149
        %p151 = pneg %p60
        %p152 = pneg %p57
        %p153 = pneg %p90
        %p154 = pneg %p87
        %s155 = sand.u32 %s77, 1
        %s156 = scalar_lea.sflag [#allocation4], %s155
        %s157 = sand.u32 %s77, 1
        %s158 = smul.addr %s157, 8
        %s159 = scalar_lea.vmem [#allocation5], %s158
        %s160 = smul.u32 2, %s24
        %s161 = smul.u32 2, %s24
        %v162 = vld [vmem:[%s141] sm:$0x3]
        %v164 = vlaneseq
        %v165 = vshrl.u32 %v164, 7
        %v166 = vsub.s32 0, %v165
        %v167 = vrot.slane %v162, %v166
        %v168 = vlaneseq
        %v169 = vshrl.u32 %v168, 7
        %v170 = vsub.s32 1, %v169
        %v171 = vrot.slane %v162, %v170
        %v172 = vcombine.low %v167, %v171
        %174 = vst [vmem:[%s159] sm:$0xff] %v172
        %s175 = sand.u32 %s77, 1
        %s176 = scalar_lea.sflag [#allocation4], %s175
        %s177 = sand.u32 %s77, 1
        %s178 = smul.addr %s177, 8
        %s179 = scalar_lea.vmem [#allocation5], %s178
        // Predicated region
        $region29: #{tpu_custom_call.1} parent=23 // pred_check
          %p180 = pneg %p87
        $region30: #{tpu_custom_call.1} parent=23 // pred_check_branch
          %182 = sbr.rel (%p180) target = $region32
        $region31: #{tpu_custom_call.1} parent=23 // pred_region
          %s183 = smul.u32 2, %s24
          %s185 = ssub.s32 128, 128
          %186 = vsyncadd %s176, %s185
          %s187 = smul.addr %s25, 2
          %s188 = sadd.s32 %s183, %s187
          %s189 = smul.addr %s23, 2
          %s190 = sadd.s32 %s188, %s189
          %s191 = smul.addr %s190, 64
          %s192 = scalar_lea.hbm %s1, %s191
          %s194 = sshll.u32 %s179, 4
          %s195 = int_to_ptr.vmem [resolvable:$true] %s194
          %197 = dma.vmem_to_hbm [thread:$0]  %s195, 128, %s192, %s176
        $region32: #{tpu_custom_call.1} parent=23 // pred_fallthru
          _
      $region24: #{tpu_custom_call.1} parent=5 // pred_fallthru
        _
      %p198 = scmp.le.s32.totalorder 2, %s13
      // Predicated region
      $region33: #{tpu_custom_call.1} parent=5 // pred_check
        %p199 = pneg %p198
      $region34: #{tpu_custom_call.1} parent=5 // pred_check_branch
        %201 = sbr.rel (%p199) target = $region36
      $region35: #{tpu_custom_call.1} parent=5 // pred_region
        %s202 = ssub.s32 %s13, 2
        // Predicated region
        $region37: #{tpu_custom_call.1} parent=35 // pred_check
          %p203 = pneg %p93
        $region38: #{tpu_custom_call.1} parent=35 // pred_check_branch
          %205 = sbr.rel (%p203) target = $region40
        $region39: #{tpu_custom_call.1} parent=35 // pred_region
          %s206 = sand.u32 %s78, 1
          %s207 = scalar_lea.sflag [#allocation4], %s206
          %s208 = sand.u32 %s78, 1
          %s209 = smul.addr %s208, 8
          %s210 = scalar_lea.vmem [#allocation5], %s209
          %211 = dma.done %s207, 128
        $region40: #{tpu_custom_call.1} parent=35 // pred_fallthru
          _
      $region36: #{tpu_custom_call.1} parent=5 // pred_fallthru
        _
    $region6: #{tpu_custom_call.1} parent=1 // loop_footer
      %s17 = sadd.s32 1, %s13
    $region7: #{tpu_custom_call.1} parent=1 // loop_footer_branch
      %12 = sbr.rel target = $region3
    $region8: #{tpu_custom_call.1} parent=1 // loop_exit
      _
    %212 = vsyncpa [#allocation3], 1
    %s213 = scalar_lea.sflag [#allocation3], 1
    %214 = vsyncpa %s213, 1
    %215 = vsyncpa [#allocation4], 1
    %s216 = scalar_lea.sflag [#allocation4], 1
    %217 = vsyncpa %s216, 1

</llo_original>
